<compile_context>
chip_gen: v7x
topology: tpu7x:2x2x1
jax: 0.10.0
libtpu: 0.0.40
codegen_flags: <defaults>
</compile_context>

<pallas_src>
import functools
import math

import numpy as np
import jax
import jax.numpy as jnp
from jax import lax
from jax.experimental import pallas as pl
from jax.experimental.pallas import tpu as pltpu

K = 25                      # LDkernel_size
PAD = K // 2                # 12 replicate-padded rows per side (PyTorch semantics)
HALO = 16                   # PAD rounded up to a multiple of 16 (bf16 sublane packing)
T_MAX = 128                 # output rows per MXU banded matmul (sub-tile)
VMEM_BUDGET = 10 * 1024 * 1024   # per-grid-step working-set target (bytes)


def _round_up(x, m):
    return (x + m - 1) // m * m


def _gaussian_softmax_weights():
    # Exactly the PyTorch __init__: gaussian-shaped raw weights, then softmax.
    sigma = 1.0
    raw = np.array(
        [math.exp(-((i - PAD) / (2.0 * sigma)) ** 2) for i in range(K)],
        dtype=np.float64,
    )
    e = np.exp(raw - raw.max())
    return (e / e.sum()).astype(np.float32)


_W = _gaussian_softmax_weights()   # trace-time constants (never loaded from SMEM)
_BIAS = 0.0                        # conv bias is initialised to 0.0 -> folded away


def _make_band(t):
    """(t, t + 2*HALO) banded tap matrix so out[r] = sum_k w[k] * win[r + 4 + k].

    Window rows are chunk rows shifted by -HALO, i.e. window[r + 4 + k] is the
    global row (chunk_row r) - PAD + k, matching conv1d with replicate padding.
    """
    band = np.zeros((t, t + 2 * HALO), dtype=np.float32)
    off = HALO - PAD   # = 4
    for i in range(t):
        band[i, i + off:i + off + K] = _W
    return band


def _is_v5():
    try:
        return "v5" in jax.devices()[0].device_kind.lower()
    except Exception:
        return False


def gd_kernel(band_ref, x_ref, top_ref, bot_ref, o_ref, xpad_ref, *,
              t, ch, rem, num_l):
    """One (batch, channel-tile, L-chunk) grid step.

    Assembles the replicate-padded chunk (bf16) in VMEM scratch, then runs the
    25-tap conv as a sequence of banded MXU matmuls over aligned sub-tiles.
    """
    cdt = xpad_ref.dtype   # bf16 compute dtype (single-pass MXU operands)

    # --- assemble [top halo (16) ; chunk (ch) ; bottom halo (16)] ------------
    xpad_ref[0:HALO, :] = top_ref[...].astype(cdt)
    xpad_ref[HALO:HALO + ch, :] = x_ref[...].astype(cdt)
    xpad_ref[HALO + ch:HALO + ch + HALO, :] = bot_ref[...].astype(cdt)

    # The globally-last chunk may be partial: rows past `rem` in the x block
    # are unspecified (out-of-bounds block read).  Overwrite them with the
    # replicate of the last valid row so no garbage reaches valid outputs.
    if rem < ch:   # static
        @pl.when(pl.program_id(2) == num_l - 1)
        def _():
            last = xpad_ref[HALO + rem - 1:HALO + rem, :]       # (1, c_tile)
            xpad_ref[HALO + rem:, :] = jnp.broadcast_to(
                last, (ch + HALO - rem, xpad_ref.shape[1]))

    band = band_ref[...]   # (t, t + 2*HALO) bf16, resident across sub-tiles

    # --- banded matmuls over 16-aligned sub-tiles (fully unrolled) -----------
    def body(j, carry):
        start = pl.multiple_of(j * t, t)
        win = xpad_ref[pl.ds(start, t + 2 * HALO), :]           # bf16
        o_ref[pl.ds(start, t), :] = jnp.dot(
            band, win, preferred_element_type=jnp.float32
        ).astype(o_ref.dtype)
        return carry

    lax.fori_loop(0, ch // t, body, 0, unroll=True)


@functools.partial(jax.jit, static_argnames=("max_chunk_rows",))
def gd_forward(x, max_chunk_rows=None):
    """x: (B, L, C) -> (B, L, C); shared 1x25 Gaussian conv along L per channel."""
    B, L, C = x.shape
    isz = jnp.dtype(x.dtype).itemsize

    # --- lane (channel) tile: 256 on v6e/v7x, 128 otherwise; full C when C is
    #     not a multiple of 128 (block == full dim -> no lane zero-pad pass).
    if C % 256 == 0 and not _is_v5():
        c_tile = 256
    elif C % 128 == 0:
        c_tile = 128
    else:
        c_tile = C
    num_c = C // c_tile

    # --- L sub-tile (rows per matmul) and L chunk (rows per grid step),
    #     sized from a per-step VMEM budget: double-buffered x + out blocks
    #     (input dtype) plus the bf16 scratch.
    t = min(T_MAX, _round_up(L, HALO))
    per_row = c_tile * (4 * isz + 2)
    ch_cap = max(t, (VMEM_BUDGET // per_row) // t * t)
    if max_chunk_rows is not None:
        ch_cap = max(t, (max_chunk_rows // t) * t)
    ch = min(_round_up(L, t), ch_cap)
    num_l = pl.cdiv(L, ch)
    rem = L - (num_l - 1) * ch          # valid rows in the last chunk (static)

    # --- tiny replicate-halo slabs: 16 rows above / below every chunk.
    #     Costs ~32*num_l rows of gather (a few % of one pass) instead of the
    #     previous full edge-pad + transpose passes over the whole tensor.
    rows = np.arange(HALO)
    l_ids = np.arange(num_l)[:, None]
    top_idx = np.clip(l_ids * ch - HALO + rows[None, :], 0, L - 1)
    bot_idx = np.clip((l_ids + 1) * ch + rows[None, :], 0, L - 1)
    halo_top = jnp.take(x, jnp.asarray(top_idx), axis=1)   # (B, num_l, 16, C)
    halo_bot = jnp.take(x, jnp.asarray(bot_idx), axis=1)   # (B, num_l, 16, C)

    # bf16 MXU operands (single-pass); accumulation stays f32 inside the dot.
    band = jnp.asarray(_make_band(t), dtype=jnp.bfloat16)

    kernel = functools.partial(gd_kernel, t=t, ch=ch, rem=rem, num_l=num_l)

    return pl.pallas_call(
        kernel,
        out_shape=jax.ShapeDtypeStruct((B, L, C), x.dtype),
        grid=(B, num_c, num_l),
        in_specs=[
            # band: small constant block, identical for every grid step
            pl.BlockSpec((t, t + 2 * HALO), lambda b, c, l: (0, 0)),
            # x: one (chunk, channel-tile) slab per step, auto double-buffered
            pl.BlockSpec((None, ch, c_tile), lambda b, c, l: (b, l, c)),
            # halo slabs (16 rows each)
            pl.BlockSpec((None, None, HALO, c_tile), lambda b, c, l: (b, l, 0, c)),
            pl.BlockSpec((None, None, HALO, c_tile), lambda b, c, l: (b, l, 0, c)),
        ],
        out_specs=pl.BlockSpec((None, ch, c_tile), lambda b, c, l: (b, l, c)),
        scratch_shapes=[pltpu.VMEM((ch + 2 * HALO, c_tile), jnp.bfloat16)],
        compiler_params=pltpu.CompilerParams(
            dimension_semantics=("parallel", "parallel", "parallel"),
            vmem_limit_bytes=32 * 1024 * 1024,
        ),
    )(band, x, halo_top, halo_bot)


def ref_gd(x):
    """Pure numpy (float64) reference of the PyTorch forward."""
    w = _gaussian_softmax_weights().astype(np.float64)
    x64 = np.asarray(x, dtype=np.float64)
    B, L, C = x64.shape
    xp = np.concatenate(
        [np.repeat(x64[:, :1, :], PAD, axis=1), x64,
         np.repeat(x64[:, -1:, :], PAD, axis=1)],
        axis=1,
    )
    out = np.zeros((B, L, C), dtype=np.float64)
    for k in range(K):
        out += w[k] * xp[:, k:k + L, :]
    return out + _BIAS


if __name__ == "__main__":
    key = jax.random.PRNGKey(0)
    k1, k2 = jax.random.split(key)

    # Case 1: module-like tiny shape (single chunk/sub-tile, replicate at both ends).
    x1 = jax.random.normal(k1, (2, 16, 4), dtype=jnp.float32)
    out1 = jax.block_until_ready(gd_forward(x1))

    # Case 2: multi-chunk / multi-sub-tile path (forced small chunks to exercise
    # the halo + partial-last-chunk handling), f32 and bf16 inputs.
    x2 = jax.random.normal(k2, (2, 400, 8), dtype=jnp.float32)
    out2 = jax.block_until_ready(gd_forward(x2, max_chunk_rows=256))

    x3 = x2.astype(jnp.bfloat16)
    out3 = jax.block_until_ready(gd_forward(x3, max_chunk_rows=256))

    # Tolerance covers the bf16 MXU-operand path (~2^-9 relative rounding of
    # inputs/taps); structural bugs (tap alignment / halo / replicate padding /
    # chunk stitching) produce errors orders of magnitude larger.
    np.testing.assert_allclose(np.asarray(out1), ref_gd(x1), rtol=2e-2, atol=2e-2)
    np.testing.assert_allclose(np.asarray(out2), ref_gd(x2), rtol=2e-2, atol=2e-2)
    ref3 = ref_gd(np.asarray(x3.astype(jnp.float32)))
    np.testing.assert_allclose(np.asarray(out3.astype(jnp.float32)), ref3,
                               rtol=5e-2, atol=5e-2)
    print("KERNEL_OK")
</pallas_src>

<mosaic_0001>
module attributes {stable_mosaic.version = 11 : i64} {
  func.func @gd_kernel(%arg0: i32, %arg1: i32, %arg2: i32, %arg3: memref<16x48xbf16, #tpu.memory_space<vmem>>, %arg4: memref<1x16x4xf32, #tpu.memory_space<vmem>>, %arg5: memref<1x1x16x4xf32, #tpu.memory_space<vmem>>, %arg6: memref<1x1x16x4xf32, #tpu.memory_space<vmem>>, %arg7: memref<1x16x4xf32, #tpu.memory_space<vmem>>, %arg8: memref<48x4xbf16, #tpu.memory_space<vmem>>) attributes {dimension_semantics = [#tpu.dimension_semantics<parallel>, #tpu.dimension_semantics<parallel>, #tpu.dimension_semantics<parallel>], iteration_bounds = array<i64: 2, 1, 1>, scalar_prefetch = 0 : i64, scratch_operands = 1 : i64, tpu.core_type = #tpu.core_type<tc>, window_params = [{pipeline_mode = #tpu.pipeline_mode<synchronous>, transform_indices = @transform_0, window_bounds = array<i64: 16, 48>}, {transform_indices = @transform_1, window_bounds = array<i64: 1, 16, 4>}, {transform_indices = @transform_2, window_bounds = array<i64: 1, 1, 16, 4>}, {transform_indices = @transform_3, window_bounds = array<i64: 1, 1, 16, 4>}, {transform_indices = @transform_4, window_bounds = array<i64: 1, 16, 4>}]} {
    %c0 = arith.constant 0 : index
    %c0_0 = arith.constant 0 : index
    %c0_1 = arith.constant 0 : index
    %c0_2 = arith.constant 0 : index
    %0 = vector.load %arg5[%c0, %c0_0, %c0_1, %c0_2] : memref<1x1x16x4xf32, #tpu.memory_space<vmem>>, vector<1x1x16x4xf32>
    %1 = vector.shape_cast %0 : vector<1x1x16x4xf32> to vector<16x4xf32>
    %2 = arith.truncf %1 : vector<16x4xf32> to vector<16x4xbf16>
    %c0_3 = arith.constant 0 : index
    %c0_4 = arith.constant 0 : index
    %3 = vector.load %arg8[%c0_3, %c0_4] : memref<48x4xbf16, #tpu.memory_space<vmem>>, vector<16x4xbf16>
    tpu.vector_store %arg8[%c0_3, %c0_4], %2 {strides = array<i32>} : memref<48x4xbf16, #tpu.memory_space<vmem>>, vector<16x4xbf16>,
    %c0_5 = arith.constant 0 : index
    %c0_6 = arith.constant 0 : index
    %c0_7 = arith.constant 0 : index
    %4 = vector.load %arg4[%c0_5, %c0_6, %c0_7] : memref<1x16x4xf32, #tpu.memory_space<vmem>>, vector<1x16x4xf32>
    %5 = vector.shape_cast %4 : vector<1x16x4xf32> to vector<16x4xf32>
    %6 = arith.truncf %5 : vector<16x4xf32> to vector<16x4xbf16>
    %c16 = arith.constant 16 : index
    %c0_8 = arith.constant 0 : index
    %7 = vector.load %arg8[%c16, %c0_8] : memref<48x4xbf16, #tpu.memory_space<vmem>>, vector<16x4xbf16>
    tpu.vector_store %arg8[%c16, %c0_8], %6 {strides = array<i32>} : memref<48x4xbf16, #tpu.memory_space<vmem>>, vector<16x4xbf16>,
    %c0_9 = arith.constant 0 : index
    %c0_10 = arith.constant 0 : index
    %c0_11 = arith.constant 0 : index
    %c0_12 = arith.constant 0 : index
    %8 = vector.load %arg6[%c0_9, %c0_10, %c0_11, %c0_12] : memref<1x1x16x4xf32, #tpu.memory_space<vmem>>, vector<1x1x16x4xf32>
    %9 = vector.shape_cast %8 : vector<1x1x16x4xf32> to vector<16x4xf32>
    %10 = arith.truncf %9 : vector<16x4xf32> to vector<16x4xbf16>
    %c32 = arith.constant 32 : index
    %c0_13 = arith.constant 0 : index
    %11 = vector.load %arg8[%c32, %c0_13] : memref<48x4xbf16, #tpu.memory_space<vmem>>, vector<16x4xbf16>
    tpu.vector_store %arg8[%c32, %c0_13], %10 {strides = array<i32>} : memref<48x4xbf16, #tpu.memory_space<vmem>>, vector<16x4xbf16>,
    %c0_14 = arith.constant 0 : index
    %c0_15 = arith.constant 0 : index
    %12 = vector.load %arg3[%c0_14, %c0_15] : memref<16x48xbf16, #tpu.memory_space<vmem>>, vector<16x48xbf16>
    %c0_i32 = arith.constant 0 : i32
    %c16_i32 = arith.constant 16 : i32
    %13 = arith.muli %c0_i32, %c16_i32 : i32
    %14 = tpu.assume_multiple %13, 16 : i32
    %15 = arith.index_cast %14 : i32 to index
    %c0_16 = arith.constant 0 : index
    %16 = vector.load %arg8[%15, %c0_16] : memref<48x4xbf16, #tpu.memory_space<vmem>>, vector<48x4xbf16>
    %cst = arith.constant dense<0.000000e+00> : vector<16x4xf32>
    %17 = tpu.matmul %12, %16, %cst {dimension_numbers = #tpu.dot_dimension_numbers<[1], [0], [0], [1], [0, 0, 1, 1], [], []>} : vector<16x48xbf16>, vector<48x4xbf16>, vector<16x4xf32> -> vector<16x4xf32>
    %c0_17 = arith.constant 0 : index
    %18 = arith.index_cast %14 : i32 to index
    %c0_18 = arith.constant 0 : index
    %19 = vector.load %arg7[%c0_17, %18, %c0_18] : memref<1x16x4xf32, #tpu.memory_space<vmem>>, vector<1x16x4xf32>
    %20 = vector.shape_cast %19 : vector<1x16x4xf32> to vector<16x4xf32>
    %21 = vector.shape_cast %17 : vector<16x4xf32> to vector<1x16x4xf32>
    tpu.vector_store %arg7[%c0_17, %18, %c0_18], %21 {strides = array<i32>} : memref<1x16x4xf32, #tpu.memory_space<vmem>>, vector<1x16x4xf32>,
    %c1_i32 = arith.constant 1 : i32
    return
  }
  func.func @transform_0(%arg0: i32, %arg1: i32, %arg2: i32) -> (i32, i32) {
    %c0_i32 = arith.constant 0 : i32
    %c0_i32_0 = arith.constant 0 : i32
    %c0_i32_1 = arith.constant 0 : i32
    return %c0_i32, %c0_i32_0 : i32, i32
  }
  func.func @transform_1(%arg0: i32, %arg1: i32, %arg2: i32) -> (i32, i32, i32) {
    %c0_i32 = arith.constant 0 : i32
    return %arg0, %arg2, %arg1 : i32, i32, i32
  }
  func.func @transform_2(%arg0: i32, %arg1: i32, %arg2: i32) -> (i32, i32, i32, i32) {
    %c0_i32 = arith.constant 0 : i32
    %c0_i32_0 = arith.constant 0 : i32
    return %arg0, %arg2, %c0_i32, %arg1 : i32, i32, i32, i32
  }
  func.func @transform_3(%arg0: i32, %arg1: i32, %arg2: i32) -> (i32, i32, i32, i32) {
    %c0_i32 = arith.constant 0 : i32
    %c0_i32_0 = arith.constant 0 : i32
    return %arg0, %arg2, %c0_i32, %arg1 : i32, i32, i32, i32
  }
  func.func @transform_4(%arg0: i32, %arg1: i32, %arg2: i32) -> (i32, i32, i32) {
    %c0_i32 = arith.constant 0 : i32
    return %arg0, %arg2, %arg1 : i32, i32, i32
  }
}

</mosaic_0001>

<llo_original>
// kernel: gd_forward.1
$region0: #{gd_forward.1}
  #allocation0 [shape = 'u32[]', space=smem, size = 0x4, offset = 0x4, fixed_abs, tag = 'smem constant byte address 0x4 - core index']
  #allocation1 [shape = 'u32[144,128]{1,0:T(1,128)}', space=vmem, size = 0x12000, scoped, tag = 'internal scratch']
  #allocation2 [shape = 'bf16[48,4]{1,0:T(16,128)(2,1)}', space=vmem, size = 0x3000, scoped, tag = 'scratch operand']
  %s0 = inlined_call_operand.vmem [shape: bf16[16,48], index: 0, kind: input, shape index: {}]
  %s1 = inlined_call_operand.vmem [shape: f32[2,16,4], index: 1, kind: input, shape index: {}]
  %s2 = inlined_call_operand.vmem [shape: f32[2,1,16,4], index: 2, kind: input, shape index: {}]
  %s3 = inlined_call_operand.vmem [shape: f32[2,1,16,4], index: 3, kind: input, shape index: {}]
  %s4 = inlined_call_operand.vmem [shape: f32[2,16,4], index: 4, kind: output, shape index: {}]
  %s5 = sld [smem:[#allocation0]]
  $region49: #{gd_forward.1} parent=0
    _
  %s7 = ssub.s32 1, %s5
  %s8 = scalar_select 0, %s7, %s5
  loop: start=0, step=1, limit=4
  $region2: #{gd_forward.1} parent=0 // loop_pre_header
    _
  $region3: #{gd_forward.1} parent=0 // loop_header
    %s10 = sphi 0, %s14
    %p11 = scmp.ge.s32.totalorder %s10, 4
    %s17 = sphi 0, %s36
    %s18 = sphi 0, %s32
    %s19 = sphi 0, %s28
    %s20 = sphi 0, %s17
    %s21 = sphi 0, %s18
    %s22 = sphi 0, %s19
    %s23 = sphi 0, %s20
    %s24 = sphi 0, %s21
    %s25 = sphi 0, %s22
    %s37 = sphi 0, %s37
    %s39 = sphi 0, %s37
    %s40 = sphi 0, %s39
    %s54 = sphi 0, %s40
    %s64 = sphi 0, %s66
    %s67 = sphi 0, %s64
    %s68 = sphi 0, %s67
    %s84 = sphi 0, %s68
    %s94 = sphi 0, %s96
    %s97 = sphi 0, %s94
    %s98 = sphi 0, %s97
    %s114 = sphi 0, %s98
    %s124 = sphi 0, %s126
    %s127 = sphi 0, %s124
    %s128 = sphi 0, %s127
    %s144 = sphi 0, %s128
    %s154 = sphi 0, %s156
    %s157 = sphi 0, %s154
    %s158 = sphi 0, %s157
    %s174 = sphi 0, %s158
  $region4: #{gd_forward.1} parent=0 // loop_header_branch
    %13 = sbr.rel (%p11) target = $region8
  $region5: #{gd_forward.1} parent=0 // loop_body
    %s15 = ssub.s32 %s10, 1
    %s16 = ssub.s32 %s10, 2
    %s26 = sadd.s32 1, %s19
    %p27 = scmp.ge.s32.totalorder %s26, 1
    %s28 = scalar_select %p27, 0, %s26
    %s29 = sadd.s32 1, %s18
    %s30 = scalar_select %p27, %s29, %s18
    %p31 = scmp.ge.s32.totalorder %s30, 1
    %s32 = scalar_select %p31, 0, %s30
    %s33 = sadd.s32 1, %s17
    %s34 = scalar_select %p31, %s33, %s17
    %p35 = scmp.ge.s32.totalorder %s34, 2
    %s36 = scalar_select %p35, 0, %s34
    %s38 = sadd.s32 %s37, 1
    %p41 = scmp.eq.s32.totalorder %s10, 1
    %p42 = scmp.ne.s32.totalorder %s37, %s39
    %p43 = scmp.eq.s32.totalorder %s10, 0
    %p44 = por %p42, %p43
    %p45 = scmp.ne.s32.totalorder %s37, %s39
    %p46 = scmp.eq.s32.totalorder %s15, 1
    %p47 = por %p45, %p46
    %p48 = scmp.ne.s32.totalorder %s39, %s40
    %p49 = scmp.eq.s32.totalorder %s15, 0
    %p50 = por %p48, %p49
    %p51 = scmp.ne.s32.totalorder %s39, %s40
    %p52 = scmp.eq.s32.totalorder %s16, 1
    %p53 = por %p51, %p52
    %p55 = scmp.ne.s32.totalorder %s40, %s54
    %p56 = scmp.eq.s32.totalorder %s16, 0
    %p57 = por %p55, %p56
    %s58 = ssub.s32 %s17, %s36
    %s59 = ssub.s32 %s19, %s28
    %s60 = sor.u32 %s58, %s59
    %s61 = ssub.s32 %s18, %s32
    %s62 = sor.u32 %s60, %s61
    %p63 = scmp.eq.s32.totalorder %s62, 0
    %s65 = sadd.s32 %s64, 1
    %s66 = scalar_select %p63, %s64, %s65
    %p69 = pneg %p63
    %p70 = scmp.eq.s32.totalorder %s10, 1
    %p71 = por %p69, %p70
    %p72 = scmp.ne.s32.totalorder %s64, %s67
    %p73 = scmp.eq.s32.totalorder %s10, 0
    %p74 = por %p72, %p73
    %p75 = scmp.ne.s32.totalorder %s64, %s67
    %p76 = scmp.eq.s32.totalorder %s15, 1
    %p77 = por %p75, %p76
    %p78 = scmp.ne.s32.totalorder %s67, %s68
    %p79 = scmp.eq.s32.totalorder %s15, 0
    %p80 = por %p78, %p79
    %p81 = scmp.ne.s32.totalorder %s67, %s68
    %p82 = scmp.eq.s32.totalorder %s16, 1
    %p83 = por %p81, %p82
    %p85 = scmp.ne.s32.totalorder %s68, %s84
    %p86 = scmp.eq.s32.totalorder %s16, 0
    %p87 = por %p85, %p86
    %s88 = ssub.s32 %s17, %s36
    %s89 = ssub.s32 %s19, %s28
    %s90 = sor.u32 %s88, %s89
    %s91 = ssub.s32 %s18, %s32
    %s92 = sor.u32 %s90, %s91
    %p93 = scmp.eq.s32.totalorder %s92, 0
    %s95 = sadd.s32 %s94, 1
    %s96 = scalar_select %p93, %s94, %s95
    %p99 = pneg %p93
    %p100 = scmp.eq.s32.totalorder %s10, 1
    %p101 = por %p99, %p100
    %p102 = scmp.ne.s32.totalorder %s94, %s97
    %p103 = scmp.eq.s32.totalorder %s10, 0
    %p104 = por %p102, %p103
    %p105 = scmp.ne.s32.totalorder %s94, %s97
    %p106 = scmp.eq.s32.totalorder %s15, 1
    %p107 = por %p105, %p106
    %p108 = scmp.ne.s32.totalorder %s97, %s98
    %p109 = scmp.eq.s32.totalorder %s15, 0
    %p110 = por %p108, %p109
    %p111 = scmp.ne.s32.totalorder %s97, %s98
    %p112 = scmp.eq.s32.totalorder %s16, 1
    %p113 = por %p111, %p112
    %p115 = scmp.ne.s32.totalorder %s98, %s114
    %p116 = scmp.eq.s32.totalorder %s16, 0
    %p117 = por %p115, %p116
    %s118 = ssub.s32 %s17, %s36
    %s119 = ssub.s32 %s19, %s28
    %s120 = sor.u32 %s118, %s119
    %s121 = ssub.s32 %s18, %s32
    %s122 = sor.u32 %s120, %s121
    %p123 = scmp.eq.s32.totalorder %s122, 0
    %s125 = sadd.s32 %s124, 1
    %s126 = scalar_select %p123, %s124, %s125
    %p129 = pneg %p123
    %p130 = scmp.eq.s32.totalorder %s10, 1
    %p131 = por %p129, %p130
    %p132 = scmp.ne.s32.totalorder %s124, %s127
    %p133 = scmp.eq.s32.totalorder %s10, 0
    %p134 = por %p132, %p133
    %p135 = scmp.ne.s32.totalorder %s124, %s127
    %p136 = scmp.eq.s32.totalorder %s15, 1
    %p137 = por %p135, %p136
    %p138 = scmp.ne.s32.totalorder %s127, %s128
    %p139 = scmp.eq.s32.totalorder %s15, 0
    %p140 = por %p138, %p139
    %p141 = scmp.ne.s32.totalorder %s127, %s128
    %p142 = scmp.eq.s32.totalorder %s16, 1
    %p143 = por %p141, %p142
    %p145 = scmp.ne.s32.totalorder %s128, %s144
    %p146 = scmp.eq.s32.totalorder %s16, 0
    %p147 = por %p145, %p146
    %s148 = ssub.s32 %s17, %s36
    %s149 = ssub.s32 %s19, %s28
    %s150 = sor.u32 %s148, %s149
    %s151 = ssub.s32 %s18, %s32
    %s152 = sor.u32 %s150, %s151
    %p153 = scmp.eq.s32.totalorder %s152, 0
    %s155 = sadd.s32 %s154, 1
    %s156 = scalar_select %p153, %s154, %s155
    %p159 = pneg %p153
    %p160 = scmp.eq.s32.totalorder %s10, 1
    %p161 = por %p159, %p160
    %p162 = scmp.ne.s32.totalorder %s154, %s157
    %p163 = scmp.eq.s32.totalorder %s10, 0
    %p164 = por %p162, %p163
    %p165 = scmp.ne.s32.totalorder %s154, %s157
    %p166 = scmp.eq.s32.totalorder %s15, 1
    %p167 = por %p165, %p166
    %p168 = scmp.ne.s32.totalorder %s157, %s158
    %p169 = scmp.eq.s32.totalorder %s15, 0
    %p170 = por %p168, %p169
    %p171 = scmp.ne.s32.totalorder %s157, %s158
    %p172 = scmp.eq.s32.totalorder %s16, 1
    %p173 = por %p171, %p172
    %p175 = scmp.ne.s32.totalorder %s158, %s174
    %p176 = scmp.eq.s32.totalorder %s16, 0
    %p177 = por %p175, %p176
    %p178 = scmp.le.s32.totalorder 1, %s10
    %p179 = scmp.lt.s32.totalorder %s10, 3
    %p180 = pnand %p178, %p179
    %p181 = pneg %p180
    // Predicated region
    $region9: #{gd_forward.1} parent=5 // pred_check
      _
    $region10: #{gd_forward.1} parent=5 // pred_check_branch
      %183 = sbr.rel (%p180) target = $region12
    $region11: #{gd_forward.1} parent=5 // pred_region
      %s184 = ssub.s32 %s10, 1
      // Predicated region
      $region13: #{gd_forward.1} parent=11 // pred_check
        %p185 = pneg %p50
      $region14: #{gd_forward.1} parent=11 // pred_check_branch
        %187 = sbr.rel (%p185) target = $region16
      $region15: #{gd_forward.1} parent=11 // pred_region
        _
      $region16: #{gd_forward.1} parent=11 // pred_fallthru
        _
    $region12: #{gd_forward.1} parent=5 // pred_fallthru
      _
    %p188 = scmp.lt.s32.totalorder %s10, 2
    // Predicated region
    $region17: #{gd_forward.1} parent=5 // pred_check
      %p189 = pneg %p188
    $region18: #{gd_forward.1} parent=5 // pred_check_branch
      %191 = sbr.rel (%p189) target = $region20
    $region19: #{gd_forward.1} parent=5 // pred_region
      // Predicated region
      $region21: #{gd_forward.1} parent=19 // pred_check
        %p192 = pneg %p74
      $region22: #{gd_forward.1} parent=19 // pred_check_branch
        %194 = sbr.rel (%p192) target = $region24
      $region23: #{gd_forward.1} parent=19 // pred_region
        %s195 = smul.u32 2, %s19
        %p196 = scmp.lt.s32.totalorder %s17, 1
        %s197 = scalar_select %p196, %s17, 1
        %p198 = scmp.lt.s32.totalorder %s195, 1
        %s199 = scalar_select %p198, %s195, 1
        %p200 = scmp.lt.s32.totalorder %s18, 0
        %s201 = scalar_select %p200, %s18, 0
        %s202 = sadd.s32 %s201, %s199
        %s203 = smul.addr %s197, 2
        %s204 = sadd.s32 %s202, %s203
        %s205 = smul.addr %s204, 8
        %s206 = scalar_lea.vmem %s1, %s205
        %s207 = smul.u32 2, %s19
      $region24: #{gd_forward.1} parent=19 // pred_fallthru
        _
      // Predicated region
      $region25: #{gd_forward.1} parent=19 // pred_check
        %p208 = pneg %p104
      $region26: #{gd_forward.1} parent=19 // pred_check_branch
        %210 = sbr.rel (%p208) target = $region28
      $region27: #{gd_forward.1} parent=19 // pred_region
        %p211 = scmp.lt.s32.totalorder %s17, 1
        %s212 = scalar_select %p211, %s17, 1
        %p213 = scmp.lt.s32.totalorder %s19, 0
        %s214 = scalar_select %p213, %s19, 0
        %p215 = scmp.lt.s32.totalorder %s18, 0
        %s216 = scalar_select %p215, %s18, 0
        %s217 = smul.addr %s214, 2
        %s218 = sadd.s32 %s216, %s217
        %s219 = smul.addr %s212, 2
        %s220 = sadd.s32 %s218, %s219
        %s221 = smul.addr %s220, 8
        %s222 = scalar_lea.vmem %s2, %s221
      $region28: #{gd_forward.1} parent=19 // pred_fallthru
        _
      // Predicated region
      $region29: #{gd_forward.1} parent=19 // pred_check
        %p223 = pneg %p134
      $region30: #{gd_forward.1} parent=19 // pred_check_branch
        %225 = sbr.rel (%p223) target = $region32
      $region31: #{gd_forward.1} parent=19 // pred_region
        %p226 = scmp.lt.s32.totalorder %s17, 1
        %s227 = scalar_select %p226, %s17, 1
        %p228 = scmp.lt.s32.totalorder %s19, 0
        %s229 = scalar_select %p228, %s19, 0
        %p230 = scmp.lt.s32.totalorder %s18, 0
        %s231 = scalar_select %p230, %s18, 0
        %s232 = smul.addr %s229, 2
        %s233 = sadd.s32 %s231, %s232
        %s234 = smul.addr %s227, 2
        %s235 = sadd.s32 %s233, %s234
        %s236 = smul.addr %s235, 8
        %s237 = scalar_lea.vmem %s3, %s236
      $region32: #{gd_forward.1} parent=19 // pred_fallthru
        _
    $region20: #{gd_forward.1} parent=5 // pred_fallthru
      _
    %p238 = scmp.le.s32.totalorder 1, %s10
    %p239 = scmp.lt.s32.totalorder %s10, 3
    %p240 = pnand %p238, %p239
    %p241 = pneg %p240
    // Predicated region
    $region33: #{gd_forward.1} parent=5 // pred_check
      _
    $region34: #{gd_forward.1} parent=5 // pred_check_branch
      %243 = sbr.rel (%p240) target = $region36
    $region35: #{gd_forward.1} parent=5 // pred_region
      %s244 = ssub.s32 %s10, 1
      %p245 = pneg %p50
      %p246 = pneg %p47
      %s247 = smul.u32 2, %s22
      %p248 = scmp.lt.s32.totalorder %s20, 1
      %s249 = scalar_select %p248, %s20, 1
      %p250 = scmp.lt.s32.totalorder %s247, 1
      %s251 = scalar_select %p250, %s247, 1
      %p252 = scmp.lt.s32.totalorder %s21, 0
      %s253 = scalar_select %p252, %s21, 0
      %s254 = sadd.s32 %s253, %s251
      %s255 = smul.addr %s249, 2
      %s256 = sadd.s32 %s254, %s255
      %s257 = smul.addr %s256, 8
      %s258 = scalar_lea.vmem %s1, %s257
      %p259 = pneg %p80
      %p260 = pneg %p77
      %p261 = scmp.lt.s32.totalorder %s20, 1
      %s262 = scalar_select %p261, %s20, 1
      %p263 = scmp.lt.s32.totalorder %s22, 0
      %s264 = scalar_select %p263, %s22, 0
      %p265 = scmp.lt.s32.totalorder %s21, 0
      %s266 = scalar_select %p265, %s21, 0
      %s267 = smul.addr %s264, 2
      %s268 = sadd.s32 %s266, %s267
      %s269 = smul.addr %s262, 2
      %s270 = sadd.s32 %s268, %s269
      %s271 = smul.addr %s270, 8
      %s272 = scalar_lea.vmem %s2, %s271
      %p273 = pneg %p110
      %p274 = pneg %p107
      %p275 = scmp.lt.s32.totalorder %s20, 1
      %s276 = scalar_select %p275, %s20, 1
      %p277 = scmp.lt.s32.totalorder %s22, 0
      %s278 = scalar_select %p277, %s22, 0
      %p279 = scmp.lt.s32.totalorder %s21, 0
      %s280 = scalar_select %p279, %s21, 0
      %s281 = smul.addr %s278, 2
      %s282 = sadd.s32 %s280, %s281
      %s283 = smul.addr %s276, 2
      %s284 = sadd.s32 %s282, %s283
      %s285 = smul.addr %s284, 8
      %s286 = scalar_lea.vmem %s3, %s285
      %p287 = pneg %p140
      %p288 = pneg %p137
      %p289 = pneg %p170
      %p290 = pneg %p167
      %s291 = smul.u32 2, %s22
      %p292 = scmp.lt.s32.totalorder %s20, 1
      %s293 = scalar_select %p292, %s20, 1
      %p294 = scmp.lt.s32.totalorder %s291, 1
      %s295 = scalar_select %p294, %s291, 1
      %p296 = scmp.lt.s32.totalorder %s21, 0
      %s297 = scalar_select %p296, %s21, 0
      %s298 = sadd.s32 %s297, %s295
      %s299 = smul.addr %s293, 2
      %s300 = sadd.s32 %s298, %s299
      %s301 = smul.addr %s300, 8
      %s302 = scalar_lea.vmem %s4, %s301
      %s303 = smul.u32 2, %s22
      %p304 = scmp.lt.s32.totalorder %s20, 1
      %s305 = scalar_select %p304, %s20, 1
      %p306 = scmp.lt.s32.totalorder %s303, 1
      %s307 = scalar_select %p306, %s303, 1
      %p308 = scmp.lt.s32.totalorder %s21, 0
      %s309 = scalar_select %p308, %s21, 0
      %s310 = sadd.s32 %s309, %s307
      %s311 = smul.addr %s305, 2
      %s312 = sadd.s32 %s310, %s311
      %s313 = smul.addr %s312, 8
      %s314 = scalar_lea.vmem %s1, %s313
      %s315 = smul.u32 2, %s22
      %p316 = scmp.lt.s32.totalorder %s20, 1
      %s317 = scalar_select %p316, %s20, 1
      %p318 = scmp.lt.s32.totalorder %s22, 0
      %s319 = scalar_select %p318, %s22, 0
      %p320 = scmp.lt.s32.totalorder %s21, 0
      %s321 = scalar_select %p320, %s21, 0
      %s322 = smul.addr %s319, 2
      %s323 = sadd.s32 %s321, %s322
      %s324 = smul.addr %s317, 2
      %s325 = sadd.s32 %s323, %s324
      %s326 = smul.addr %s325, 8
      %s327 = scalar_lea.vmem %s2, %s326
      %p328 = scmp.lt.s32.totalorder %s20, 1
      %s329 = scalar_select %p328, %s20, 1
      %p330 = scmp.lt.s32.totalorder %s22, 0
      %s331 = scalar_select %p330, %s22, 0
      %p332 = scmp.lt.s32.totalorder %s21, 0
      %s333 = scalar_select %p332, %s21, 0
      %s334 = smul.addr %s331, 2
      %s335 = sadd.s32 %s333, %s334
      %s336 = smul.addr %s329, 2
      %s337 = sadd.s32 %s335, %s336
      %s338 = smul.addr %s337, 8
      %s339 = scalar_lea.vmem %s3, %s338
      %s340 = smul.u32 2, %s22
      %p341 = scmp.lt.s32.totalorder %s20, 1
      %s342 = scalar_select %p341, %s20, 1
      %p343 = scmp.lt.s32.totalorder %s340, 1
      %s344 = scalar_select %p343, %s340, 1
      %p345 = scmp.lt.s32.totalorder %s21, 0
      %s346 = scalar_select %p345, %s21, 0
      %s347 = sadd.s32 %s346, %s344
      %s348 = smul.addr %s342, 2
      %s349 = sadd.s32 %s347, %s348
      %s350 = smul.addr %s349, 8
      %s351 = scalar_lea.vmem %s4, %s350
      %s352 = smul.u32 2, %s22
      %v354 = vld [vmem:[%s327] sm:$0xff]
      %v355 = vld [vmem:[%s327 + $0x8] sm:$0xff]
      %v356 = vpack.c.bf16 %v355, %v354
      %vm357 = vcmask 31744
      %358 = vst.msk [vmem:[#allocation2] sm:$0xff] %vm357, %v356
      %v359 = vld [vmem:[%s314] sm:$0xff]
      %v360 = vld [vmem:[%s314 + $0x8] sm:$0xff]
      %v361 = vpack.c.bf16 %v360, %v359
      %362 = vst.msk [vmem:[#allocation2 + $0x8] sm:$0xff] %vm357, %v361
      %v363 = vld [vmem:[%s339] sm:$0xff]
      %v364 = vld [vmem:[%s339 + $0x8] sm:$0xff]
      %v365 = vpack.c.bf16 %v364, %v363
      %366 = vst.msk [vmem:[#allocation2 + $0x10] sm:$0xff] %vm357, %v365
      %v367 = vld [vmem:[%s0] sm:$0xf]
      %v368 = vld [vmem:[%s0 + $0x4] sm:$0xf]
      %v369 = vld [vmem:[#allocation2] sm:$0xff]
      %v370 = vld [vmem:[#allocation2 + $0x8] sm:$0xff]
      %v371 = vld [vmem:[#allocation2 + $0x10] sm:$0xff]
      %v374 = vunpack.c.l.b16 %v367
      %v375 = vunpack.c.l.b16 %v368
      %v376 = vpack.c.b16 %v375, %v374
      %vm377 = vcmask 392192
      %v379 = vsel %vm377, %v376, 0
      %381 = vmatprep.subr.bf16.mxu0 0
      %382 = vmatpush1.bf16.msra.mxu0 %v369
      %383 = vmatprep.subr.bf16.mxu0 0
      %384 = vmatpush1.bf16.msra.mxu0 %v370
      %385 = vmatprep.subr.bf16.mxu0 0
      %386 = vmatpush1.bf16.msra.mxu0 %v371
      %387 = vmatprep.subr.bf16.mxu0 0
      %388 = vmatpush1.bf16.msra.mxu0 0
      %389 = vmatprep.subr.bf16.mxu0 0
      %390 = vmatpush1.bf16.msra.mxu0 0
      %391 = vmatprep.subr.bf16.mxu0 0
      %392 = vmatpush1.bf16.msra.mxu0 0
      %393 = vmatprep.subr.bf16.mxu0 0
      %394 = vmatpush1.bf16.msra.mxu0 0
      %395 = vmatprep.subr.bf16.mxu0 0
      %396 = vmatpush1.bf16.msra.mxu0 0
      %397 = vmatprep.subr.bf16.mxu0 0
      %398 = vmatpush1.bf16.msra.mxu0 0
      %399 = vmatprep.subr.bf16.mxu0 0
      %400 = vmatpush1.bf16.msra.mxu0 0
      %401 = vmatprep.subr.bf16.mxu0 0
      %402 = vmatpush1.bf16.msra.mxu0 0
      %403 = vmatprep.subr.bf16.mxu0 0
      %404 = vmatpush1.bf16.msra.mxu0 0
      %405 = vmatprep.subr.bf16.mxu0 0
      %406 = vmatpush1.bf16.msra.mxu0 0
      %407 = vmatprep.subr.bf16.mxu0 0
      %408 = vmatpush1.bf16.msra.mxu0 0
      %409 = vmatprep.subr.bf16.mxu0 0
      %410 = vmatpush1.bf16.msra.mxu0 0
      %411 = vmatprep.subr.bf16.mxu0 0
      %412 = vmatpush1.bf16.msra.mxu0 0
      %413 = vmatprep.mubr.bf16.mxu0 0
      %414 = vmatmul.mubr.bf16.gmra.mrb[0].mxu0 %v379
      %v415 = vpop.f32.mrb[0].mxu0
      %v416 = vadd.f32 0.0, %v415
      %v417 = vpop.f32.mrb[0].mxu0
      %v418 = vpop.f32.mrb[0].mxu0
      %v419 = vadd.f32 0.0, %v418
      %v420 = vpop.f32.mrb[0].mxu0
      %421 = vdwg.mxu0
      %422 = vst.msk [vmem:[%s351] sm:$0xff] %vm357, %v416
      %423 = vst.msk [vmem:[%s351 + $0x8] sm:$0xff] %vm357, %v419
      %s424 = smul.u32 2, %s22
      %p425 = scmp.lt.s32.totalorder %s20, 1
      %s426 = scalar_select %p425, %s20, 1
      %p427 = scmp.lt.s32.totalorder %s424, 1
      %s428 = scalar_select %p427, %s424, 1
      %p429 = scmp.lt.s32.totalorder %s21, 0
      %s430 = scalar_select %p429, %s21, 0
      %s431 = sadd.s32 %s430, %s428
      %s432 = smul.addr %s426, 2
      %s433 = sadd.s32 %s431, %s432
      %s434 = smul.addr %s433, 8
      %s435 = scalar_lea.vmem %s4, %s434
      // Predicated region
      $region37: #{gd_forward.1} parent=35 // pred_check
        %p436 = pneg %p167
      $region38: #{gd_forward.1} parent=35 // pred_check_branch
        %438 = sbr.rel (%p436) target = $region40
      $region39: #{gd_forward.1} parent=35 // pred_region
        %s439 = smul.u32 2, %s22
      $region40: #{gd_forward.1} parent=35 // pred_fallthru
        _
    $region36: #{gd_forward.1} parent=5 // pred_fallthru
      _
    %p440 = scmp.le.s32.totalorder 2, %s10
    // Predicated region
    $region41: #{gd_forward.1} parent=5 // pred_check
      %p441 = pneg %p440
    $region42: #{gd_forward.1} parent=5 // pred_check_branch
      %443 = sbr.rel (%p441) target = $region44
    $region43: #{gd_forward.1} parent=5 // pred_region
      %s444 = ssub.s32 %s10, 2
      // Predicated region
      $region45: #{gd_forward.1} parent=43 // pred_check
        %p445 = pneg %p173
      $region46: #{gd_forward.1} parent=43 // pred_check_branch
        %447 = sbr.rel (%p445) target = $region48
      $region47: #{gd_forward.1} parent=43 // pred_region
        %s448 = smul.u32 2, %s25
        %p449 = scmp.lt.s32.totalorder %s23, 1
        %s450 = scalar_select %p449, %s23, 1
        %p451 = scmp.lt.s32.totalorder %s448, 1
        %s452 = scalar_select %p451, %s448, 1
        %p453 = scmp.lt.s32.totalorder %s24, 0
        %s454 = scalar_select %p453, %s24, 0
        %s455 = sadd.s32 %s454, %s452
        %s456 = smul.addr %s450, 2
        %s457 = sadd.s32 %s455, %s456
        %s458 = smul.addr %s457, 8
        %s459 = scalar_lea.vmem %s4, %s458
      $region48: #{gd_forward.1} parent=43 // pred_fallthru
        _
    $region44: #{gd_forward.1} parent=5 // pred_fallthru
      _
  $region6: #{gd_forward.1} parent=0 // loop_footer
    %s14 = sadd.s32 1, %s10
  $region7: #{gd_forward.1} parent=0 // loop_footer_branch
    %9 = sbr.rel target = $region3
  $region8: #{gd_forward.1} parent=0 // loop_exit
    _

</llo_original>
